<compile_context>
chip_gen: v5e
topology: v5e:2x2
jax: 0.10.0
libtpu: 0.0.40
codegen_flags: <defaults>
</compile_context>

<pallas_src>
import functools
import random

import jax
import jax.numpy as jnp
from jax.experimental import pallas as pl
from jax.experimental.pallas import tpu as pltpu

SUBLANE = 8
LANE = 128


# ----------------------------- padding helpers -----------------------------

def _round_up(x, m):
    return ((x + m - 1) // m) * m


def _pad_to(x, shape):
    return jnp.pad(x, [(0, s - d) for d, s in zip(x.shape, shape)])


def _pad_gate_cols(w, h, h_pad):
    """(..., 4*h) -> (..., 4*h_pad): gate g placed at [g*h_pad, g*h_pad + h)."""
    parts = []
    for g in range(4):
        blk = w[..., g * h:(g + 1) * h]
        parts.append(_pad_to(blk, blk.shape[:-1] + (h_pad,)))
    return jnp.concatenate(parts, axis=-1)


# ----------------------------- Pallas kernels ------------------------------

def _encoder_kernel(x_ref, wih_ref, whh_ref, b_ref, h_ref, c_ref):
    """One grid step = one source timestep.  h_ref / c_ref are VMEM-resident
    output accumulators (constant block index) carrying the LSTM state."""
    hp = h_ref.shape[-1]

    @pl.when(pl.program_id(0) == 0)
    def _():
        h_ref[...] = jnp.zeros_like(h_ref)
        c_ref[...] = jnp.zeros_like(c_ref)

    x = x_ref[0]
    h = h_ref[...]
    c = c_ref[...]
    gates = (jnp.dot(x, wih_ref[...], preferred_element_type=jnp.float32)
             + jnp.dot(h, whh_ref[...], preferred_element_type=jnp.float32)
             + b_ref[...])
    i = jax.nn.sigmoid(gates[:, 0 * hp:1 * hp])
    f = jax.nn.sigmoid(gates[:, 1 * hp:2 * hp])
    g = jnp.tanh(gates[:, 2 * hp:3 * hp])
    o = jax.nn.sigmoid(gates[:, 3 * hp:4 * hp])
    c_new = f * c + i * g
    h_ref[...] = o * jnp.tanh(c_new)
    c_ref[...] = c_new


def _decoder_kernel(flags_ref,                                  # SMEM (L-1,)
                    tf_emb_ref, h0_ref, c0_ref,
                    wih_ref, whh_ref, b_ref, wfc_ref, bfc_ref, emb_ref,
                    out_ref,
                    h_sc, c_sc, pe_sc,
                    *, vocab_size):
    """Fused decoder step k (k = t-1): LSTM cell + vocab projection + argmax
    + teacher-forcing input select + next-token embedding (one-hot matmul)."""
    k = pl.program_id(0)
    hp = h_sc.shape[-1]

    @pl.when(k == 0)
    def _():
        h_sc[...] = h0_ref[...]
        c_sc[...] = c0_ref[...]
        pe_sc[...] = jnp.zeros_like(pe_sc)

    # flag==1 -> embedded teacher token; flag==0 -> embedding of previous
    # step's argmax prediction (carried in pe_sc).
    sel = (flags_ref[k] > 0).astype(jnp.float32)
    x = sel * tf_emb_ref[0] + (1.0 - sel) * pe_sc[...]

    h = h_sc[...]
    c = c_sc[...]
    gates = (jnp.dot(x, wih_ref[...], preferred_element_type=jnp.float32)
             + jnp.dot(h, whh_ref[...], preferred_element_type=jnp.float32)
             + b_ref[...])
    i = jax.nn.sigmoid(gates[:, 0 * hp:1 * hp])
    f = jax.nn.sigmoid(gates[:, 1 * hp:2 * hp])
    g = jnp.tanh(gates[:, 2 * hp:3 * hp])
    o = jax.nn.sigmoid(gates[:, 3 * hp:4 * hp])
    c_new = f * c + i * g
    h_new = o * jnp.tanh(c_new)

    logits = (jnp.dot(h_new, wfc_ref[...], preferred_element_type=jnp.float32)
              + bfc_ref[...])

    # In-kernel argmax over the real vocab lanes (padded lanes masked off),
    # first-max tie-break like torch.argmax, then one-hot @ embedding table.
    col = jax.lax.broadcasted_iota(jnp.int32, logits.shape, 1)
    colf = col.astype(jnp.float32)
    masked = jnp.where(col < vocab_size, logits, -1e30)
    mx = jnp.max(masked, axis=-1, keepdims=True)
    winner = jnp.min(jnp.where(masked >= mx, colf, 1e9),
                     axis=-1, keepdims=True)
    onehot = (colf == winner).astype(jnp.float32)
    pe_sc[...] = jnp.dot(onehot, emb_ref[...],
                         preferred_element_type=jnp.float32)

    out_ref[0] = logits
    h_sc[...] = h_new
    c_sc[...] = c_new


# ------------------------------ pallas wrappers -----------------------------

def encoder_forward(src_emb_p, wih_p, whh_p, b_p):
    s, b_pad, e_pad = src_emb_p.shape
    h_pad = whh_p.shape[0]
    out_shape = (jax.ShapeDtypeStruct((b_pad, h_pad), jnp.float32),
                 jax.ShapeDtypeStruct((b_pad, h_pad), jnp.float32))
    return pl.pallas_call(
        _encoder_kernel,
        grid=(s,),
        in_specs=[
            pl.BlockSpec((1, b_pad, e_pad), lambda t: (t, 0, 0)),
            pl.BlockSpec((e_pad, 4 * h_pad), lambda t: (0, 0)),
            pl.BlockSpec((h_pad, 4 * h_pad), lambda t: (0, 0)),
            pl.BlockSpec((1, 4 * h_pad), lambda t: (0, 0)),
        ],
        out_specs=(
            pl.BlockSpec((b_pad, h_pad), lambda t: (0, 0)),
            pl.BlockSpec((b_pad, h_pad), lambda t: (0, 0)),
        ),
        out_shape=out_shape,
        compiler_params=pltpu.CompilerParams(
            dimension_semantics=("arbitrary",)),
    )(src_emb_p, wih_p, whh_p, b_p)


def decoder_forward(dec_flags, tf_emb_p, h0, c0,
                    wih_p, whh_p, b_p, wfc_p, bfc_p, emb_p, vocab_size):
    steps, b_pad, e_pad = tf_emb_p.shape
    h_pad = whh_p.shape[0]
    v_pad = wfc_p.shape[1]
    kernel = functools.partial(_decoder_kernel, vocab_size=vocab_size)
    grid_spec = pltpu.PrefetchScalarGridSpec(
        num_scalar_prefetch=1,
        grid=(steps,),
        in_specs=[
            pl.BlockSpec((1, b_pad, e_pad), lambda k, flags: (k, 0, 0)),
            pl.BlockSpec((b_pad, h_pad), lambda k, flags: (0, 0)),
            pl.BlockSpec((b_pad, h_pad), lambda k, flags: (0, 0)),
            pl.BlockSpec((e_pad, 4 * h_pad), lambda k, flags: (0, 0)),
            pl.BlockSpec((h_pad, 4 * h_pad), lambda k, flags: (0, 0)),
            pl.BlockSpec((1, 4 * h_pad), lambda k, flags: (0, 0)),
            pl.BlockSpec((h_pad, v_pad), lambda k, flags: (0, 0)),
            pl.BlockSpec((1, v_pad), lambda k, flags: (0, 0)),
            pl.BlockSpec((v_pad, e_pad), lambda k, flags: (0, 0)),
        ],
        out_specs=pl.BlockSpec((1, b_pad, v_pad), lambda k, flags: (k, 0, 0)),
        scratch_shapes=[
            pltpu.VMEM((b_pad, h_pad), jnp.float32),   # h state
            pltpu.VMEM((b_pad, h_pad), jnp.float32),   # c state
            pltpu.VMEM((b_pad, e_pad), jnp.float32),   # prev prediction emb
        ],
    )
    return pl.pallas_call(
        kernel,
        grid_spec=grid_spec,
        out_shape=jax.ShapeDtypeStruct((steps, b_pad, v_pad), jnp.float32),
        compiler_params=pltpu.CompilerParams(
            dimension_semantics=("arbitrary",)),
    )(dec_flags, tf_emb_p, h0, c0, wih_p, whh_p, b_p, wfc_p, bfc_p, emb_p)


# -------------------------------- NMT forward -------------------------------

def nmt_forward(params, source, target, target_vocab_size, tf_flags):
    """Mirrors NMT.forward: outputs[t] = decoder logits at step t (t>=1)."""
    src_len, batch = source.shape
    tgt_len, _ = target.shape
    E = params["enc_emb"].shape[1]
    H = params["enc_whh"].shape[0]
    V = target_vocab_size

    b_pad = _round_up(max(batch, SUBLANE), SUBLANE)
    e_pad = _round_up(E, LANE)
    h_pad = _round_up(H, LANE)
    v_pad = _round_up(V, LANE)

    # parameters padded so each gate / output block is 128-lane aligned
    enc_wih = _pad_to(_pad_gate_cols(params["enc_wih"], H, h_pad),
                      (e_pad, 4 * h_pad))
    enc_whh = _pad_to(_pad_gate_cols(params["enc_whh"], H, h_pad),
                      (h_pad, 4 * h_pad))
    enc_b = _pad_gate_cols(params["enc_b"], H, h_pad)
    dec_wih = _pad_to(_pad_gate_cols(params["dec_wih"], H, h_pad),
                      (e_pad, 4 * h_pad))
    dec_whh = _pad_to(_pad_gate_cols(params["dec_whh"], H, h_pad),
                      (h_pad, 4 * h_pad))
    dec_b = _pad_gate_cols(params["dec_b"], H, h_pad)
    dec_wfc = _pad_to(params["dec_wfc"], (h_pad, v_pad))
    dec_bfc = _pad_to(params["dec_bfc"], (1, v_pad))
    dec_emb = _pad_to(params["dec_emb"], (v_pad, e_pad))

    # embedding gathers (single batched gathers, plain JAX glue)
    src_emb = _pad_to(params["enc_emb"][source], (src_len, b_pad, e_pad))
    tf_emb = _pad_to(params["dec_emb"][target[:tgt_len - 1]],
                     (tgt_len - 1, b_pad, e_pad))

    # step 0 always consumes target[0]; step k>=1 consumes target[k] iff the
    # (k-1)-th teacher-forcing draw succeeded, else the previous prediction.
    dec_flags = jnp.asarray(
        [1] + [int(bool(f)) for f in tf_flags[:tgt_len - 2]], dtype=jnp.int32)

    h0, c0 = encoder_forward(src_emb, enc_wih, enc_whh, enc_b)
    logits = decoder_forward(dec_flags, tf_emb, h0, c0,
                             dec_wih, dec_whh, dec_b, dec_wfc, dec_bfc,
                             dec_emb, V)
    logits = logits[:, :batch, :V]
    return jnp.concatenate(
        [jnp.zeros((1, batch, V), jnp.float32), logits], axis=0)


# ----------------------------- pure-JAX reference ---------------------------

def _reference_forward(params, source, target, V, tf_flags):
    hi = jax.lax.Precision.HIGHEST

    def cell(x, h, c, wih, whh, b):
        gates = (jnp.dot(x, wih, precision=hi)
                 + jnp.dot(h, whh, precision=hi) + b)
        H = h.shape[-1]
        i = jax.nn.sigmoid(gates[:, :H])
        f = jax.nn.sigmoid(gates[:, H:2 * H])
        g = jnp.tanh(gates[:, 2 * H:3 * H])
        o = jax.nn.sigmoid(gates[:, 3 * H:])
        c2 = f * c + i * g
        return o * jnp.tanh(c2), c2

    B = source.shape[1]
    H = params["enc_whh"].shape[0]
    h = jnp.zeros((B, H), jnp.float32)
    c = jnp.zeros((B, H), jnp.float32)
    for t in range(source.shape[0]):
        h, c = cell(params["enc_emb"][source[t]], h, c,
                    params["enc_wih"], params["enc_whh"], params["enc_b"])
    outs = [jnp.zeros((B, V), jnp.float32)]
    x_tok = target[0]
    for t in range(1, target.shape[0]):
        x = params["dec_emb"][x_tok]
        h, c = cell(x, h, c, params["dec_wih"], params["dec_whh"],
                    params["dec_b"])
        logits = (jnp.dot(h, params["dec_wfc"], precision=hi)
                  + params["dec_bfc"])
        outs.append(logits)
        pred = jnp.argmax(logits, axis=1)
        x_tok = target[t] if tf_flags[t - 1] else pred
    return jnp.stack(outs, axis=0)


# ------------------------------------ main -----------------------------------

if __name__ == "__main__":
    B = 2            # batch
    E = 32           # embedding dim
    H = 32           # hidden dim
    SRC_VOCAB = 20
    TGT_VOCAB = 16   # len(vocab)
    SRC_LEN = 8
    TGT_LEN = 8
    TEACHER_FORCE_RATIO = 0.5

    key = jax.random.PRNGKey(0)
    ks = jax.random.split(key, 12)

    def init(k, shape, scale=0.1):
        return (scale * jax.random.normal(k, shape)).astype(jnp.float32)

    params = {
        # encoder: embedding + LSTM (gate order i, f, g, o; single fused bias)
        "enc_emb": init(ks[0], (SRC_VOCAB, E)),
        "enc_wih": init(ks[1], (E, 4 * H)),
        "enc_whh": init(ks[2], (H, 4 * H)),
        "enc_b":   init(ks[3], (1, 4 * H)),
        # decoder: embedding + LSTM + linear-to-vocab
        "dec_emb": init(ks[4], (TGT_VOCAB, E)),
        "dec_wih": init(ks[5], (E, 4 * H)),
        "dec_whh": init(ks[6], (H, 4 * H)),
        "dec_b":   init(ks[7], (1, 4 * H)),
        "dec_wfc": init(ks[8], (H, TGT_VOCAB)),
        "dec_bfc": init(ks[9], (1, TGT_VOCAB)),
    }

    source = jax.random.randint(ks[10], (SRC_LEN, B), 0, SRC_VOCAB,
                                dtype=jnp.int32)
    target = jax.random.randint(ks[11], (TGT_LEN, B), 0, TGT_VOCAB,
                                dtype=jnp.int32)

    # Deterministic replacement for `random.random() < teacher_force_ratio`.
    random.seed(0)
    tf_flags = [random.random() < TEACHER_FORCE_RATIO
                for _ in range(TGT_LEN - 1)]

    outputs = nmt_forward(params, source, target, TGT_VOCAB, tf_flags)
    outputs = jax.block_until_ready(outputs)

    assert outputs.shape == (TGT_LEN, B, TGT_VOCAB)
    assert bool(jnp.all(outputs[0] == 0.0))
    assert bool(jnp.all(jnp.isfinite(outputs)))

    ref = jax.block_until_ready(
        _reference_forward(params, source, target, TGT_VOCAB, tf_flags))
    max_err = float(jnp.max(jnp.abs(outputs - ref)))
    assert max_err < 2e-3, f"mismatch vs reference: {max_err}"

    print("KERNEL_OK")
</pallas_src>

<mosaic_0001>
module attributes {stable_mosaic.version = 11 : i64} {
  func.func @_encoder_kernel(%arg0: i32, %arg1: memref<1x8x128xf32, #tpu.memory_space<vmem>>, %arg2: memref<128x512xf32, #tpu.memory_space<vmem>>, %arg3: memref<128x512xf32, #tpu.memory_space<vmem>>, %arg4: memref<1x512xf32, #tpu.memory_space<vmem>>, %arg5: memref<8x128xf32, #tpu.memory_space<vmem>>, %arg6: memref<8x128xf32, #tpu.memory_space<vmem>>) attributes {dimension_semantics = [#tpu.dimension_semantics<arbitrary>], iteration_bounds = array<i64: 8>, scalar_prefetch = 0 : i64, scratch_operands = 0 : i64, tpu.core_type = #tpu.core_type<tc>, window_params = [{transform_indices = @transform_0, window_bounds = array<i64: 1, 8, 128>}, {pipeline_mode = #tpu.pipeline_mode<synchronous>, transform_indices = @transform_1, window_bounds = array<i64: 128, 512>}, {pipeline_mode = #tpu.pipeline_mode<synchronous>, transform_indices = @transform_2, window_bounds = array<i64: 128, 512>}, {pipeline_mode = #tpu.pipeline_mode<synchronous>, transform_indices = @transform_3, window_bounds = array<i64: 1, 512>}, {pipeline_mode = #tpu.pipeline_mode<synchronous>, transform_indices = @transform_4, window_bounds = array<i64: 8, 128>}, {pipeline_mode = #tpu.pipeline_mode<synchronous>, transform_indices = @transform_5, window_bounds = array<i64: 8, 128>}]} {
    %c0_i32 = arith.constant 0 : i32
    %0 = arith.cmpi eq, %arg0, %c0_i32 : i32
    %1 = arith.extui %0 : i1 to i32
    %c0_i32_0 = arith.constant 0 : i32
    %2 = arith.cmpi ne, %1, %c0_i32_0 : i32
    scf.if %2 {
      %cst_21 = arith.constant 0.000000e+00 : f32
      %42 = vector.broadcast %cst_21 : f32 to vector<8x128xf32>
      %c0_22 = arith.constant 0 : index
      %c0_23 = arith.constant 0 : index
      %43 = vector.load %arg5[%c0_22, %c0_23] : memref<8x128xf32, #tpu.memory_space<vmem>>, vector<8x128xf32>
      tpu.vector_store %arg5[%c0_22, %c0_23], %42 {strides = array<i32>} : memref<8x128xf32, #tpu.memory_space<vmem>>, vector<8x128xf32>,
      %cst_24 = arith.constant 0.000000e+00 : f32
      %44 = vector.broadcast %cst_24 : f32 to vector<8x128xf32>
      %c0_25 = arith.constant 0 : index
      %c0_26 = arith.constant 0 : index
      %45 = vector.load %arg6[%c0_25, %c0_26] : memref<8x128xf32, #tpu.memory_space<vmem>>, vector<8x128xf32>
      tpu.vector_store %arg6[%c0_25, %c0_26], %44 {strides = array<i32>} : memref<8x128xf32, #tpu.memory_space<vmem>>, vector<8x128xf32>,
    } else {
    }
    %c0 = arith.constant 0 : index
    %c0_1 = arith.constant 0 : index
    %c0_2 = arith.constant 0 : index
    %3 = vector.load %arg1[%c0, %c0_1, %c0_2] : memref<1x8x128xf32, #tpu.memory_space<vmem>>, vector<1x8x128xf32>
    %4 = vector.shape_cast %3 : vector<1x8x128xf32> to vector<8x128xf32>
    %c0_3 = arith.constant 0 : index
    %c0_4 = arith.constant 0 : index
    %5 = vector.load %arg5[%c0_3, %c0_4] : memref<8x128xf32, #tpu.memory_space<vmem>>, vector<8x128xf32>
    %c0_5 = arith.constant 0 : index
    %c0_6 = arith.constant 0 : index
    %6 = vector.load %arg6[%c0_5, %c0_6] : memref<8x128xf32, #tpu.memory_space<vmem>>, vector<8x128xf32>
    %c0_7 = arith.constant 0 : index
    %c0_8 = arith.constant 0 : index
    %7 = vector.load %arg2[%c0_7, %c0_8] : memref<128x512xf32, #tpu.memory_space<vmem>>, vector<128x512xf32>
    %cst = arith.constant dense<0.000000e+00> : vector<8x512xf32>
    %8 = tpu.matmul %4, %7, %cst {dimension_numbers = #tpu.dot_dimension_numbers<[1], [0], [0], [1], [0, 0, 1, 1], [], []>} : vector<8x128xf32>, vector<128x512xf32>, vector<8x512xf32> -> vector<8x512xf32>
    %c0_9 = arith.constant 0 : index
    %c0_10 = arith.constant 0 : index
    %9 = vector.load %arg3[%c0_9, %c0_10] : memref<128x512xf32, #tpu.memory_space<vmem>>, vector<128x512xf32>
    %cst_11 = arith.constant dense<0.000000e+00> : vector<8x512xf32>
    %10 = tpu.matmul %5, %9, %cst_11 {dimension_numbers = #tpu.dot_dimension_numbers<[1], [0], [0], [1], [0, 0, 1, 1], [], []>} : vector<8x128xf32>, vector<128x512xf32>, vector<8x512xf32> -> vector<8x512xf32>
    %11 = arith.addf %8, %10 : vector<8x512xf32>
    %c0_12 = arith.constant 0 : index
    %c0_13 = arith.constant 0 : index
    %12 = vector.load %arg4[%c0_12, %c0_13] : memref<1x512xf32, #tpu.memory_space<vmem>>, vector<1x512xf32>
    %13 = vector.broadcast %12 : vector<1x512xf32> to vector<8x512xf32>
    %14 = arith.addf %11, %13 : vector<8x512xf32>
    %15 = vector.extract_strided_slice %14 {offsets = [0, 0], sizes = [8, 128], strides = [1, 1]} : vector<8x512xf32> to vector<8x128xf32>
    %16 = arith.negf %15 : vector<8x128xf32>
    %17 = math.exp %16 : vector<8x128xf32>
    %cst_14 = arith.constant 1.000000e+00 : f32
    %18 = vector.broadcast %cst_14 : f32 to vector<8x128xf32>
    %19 = arith.addf %18, %17 : vector<8x128xf32>
    %20 = arith.divf %18, %19 : vector<8x128xf32>
    %21 = vector.extract_strided_slice %14 {offsets = [0, 128], sizes = [8, 128], strides = [1, 1]} : vector<8x512xf32> to vector<8x128xf32>
    %22 = arith.negf %21 : vector<8x128xf32>
    %23 = math.exp %22 : vector<8x128xf32>
    %cst_15 = arith.constant 1.000000e+00 : f32
    %24 = vector.broadcast %cst_15 : f32 to vector<8x128xf32>
    %25 = arith.addf %24, %23 : vector<8x128xf32>
    %26 = arith.divf %24, %25 : vector<8x128xf32>
    %27 = vector.extract_strided_slice %14 {offsets = [0, 256], sizes = [8, 128], strides = [1, 1]} : vector<8x512xf32> to vector<8x128xf32>
    %28 = math.tanh %27 : vector<8x128xf32>
    %29 = vector.extract_strided_slice %14 {offsets = [0, 384], sizes = [8, 128], strides = [1, 1]} : vector<8x512xf32> to vector<8x128xf32>
    %30 = arith.negf %29 : vector<8x128xf32>
    %31 = math.exp %30 : vector<8x128xf32>
    %cst_16 = arith.constant 1.000000e+00 : f32
    %32 = vector.broadcast %cst_16 : f32 to vector<8x128xf32>
    %33 = arith.addf %32, %31 : vector<8x128xf32>
    %34 = arith.divf %32, %33 : vector<8x128xf32>
    %35 = arith.mulf %26, %6 : vector<8x128xf32>
    %36 = arith.mulf %20, %28 : vector<8x128xf32>
    %37 = arith.addf %35, %36 : vector<8x128xf32>
    %38 = math.tanh %37 : vector<8x128xf32>
    %39 = arith.mulf %34, %38 : vector<8x128xf32>
    %c0_17 = arith.constant 0 : index
    %c0_18 = arith.constant 0 : index
    %40 = vector.load %arg5[%c0_17, %c0_18] : memref<8x128xf32, #tpu.memory_space<vmem>>, vector<8x128xf32>
    tpu.vector_store %arg5[%c0_17, %c0_18], %39 {strides = array<i32>} : memref<8x128xf32, #tpu.memory_space<vmem>>, vector<8x128xf32>,
    %c0_19 = arith.constant 0 : index
    %c0_20 = arith.constant 0 : index
    %41 = vector.load %arg6[%c0_19, %c0_20] : memref<8x128xf32, #tpu.memory_space<vmem>>, vector<8x128xf32>
    tpu.vector_store %arg6[%c0_19, %c0_20], %37 {strides = array<i32>} : memref<8x128xf32, #tpu.memory_space<vmem>>, vector<8x128xf32>,
    return
  }
  func.func @transform_0(%arg0: i32) -> (i32, i32, i32) {
    %c0_i32 = arith.constant 0 : i32
    %c0_i32_0 = arith.constant 0 : i32
    %c0_i32_1 = arith.constant 0 : i32
    return %arg0, %c0_i32, %c0_i32_0 : i32, i32, i32
  }
  func.func @transform_1(%arg0: i32) -> (i32, i32) {
    %c0_i32 = arith.constant 0 : i32
    %c0_i32_0 = arith.constant 0 : i32
    %c0_i32_1 = arith.constant 0 : i32
    return %c0_i32, %c0_i32_0 : i32, i32
  }
  func.func @transform_2(%arg0: i32) -> (i32, i32) {
    %c0_i32 = arith.constant 0 : i32
    %c0_i32_0 = arith.constant 0 : i32
    %c0_i32_1 = arith.constant 0 : i32
    return %c0_i32, %c0_i32_0 : i32, i32
  }
  func.func @transform_3(%arg0: i32) -> (i32, i32) {
    %c0_i32 = arith.constant 0 : i32
    %c0_i32_0 = arith.constant 0 : i32
    %c0_i32_1 = arith.constant 0 : i32
    return %c0_i32, %c0_i32_0 : i32, i32
  }
  func.func @transform_4(%arg0: i32) -> (i32, i32) {
    %c0_i32 = arith.constant 0 : i32
    %c0_i32_0 = arith.constant 0 : i32
    %c0_i32_1 = arith.constant 0 : i32
    return %c0_i32, %c0_i32_0 : i32, i32
  }
  func.func @transform_5(%arg0: i32) -> (i32, i32) {
    %c0_i32 = arith.constant 0 : i32
    %c0_i32_0 = arith.constant 0 : i32
    %c0_i32_1 = arith.constant 0 : i32
    return %c0_i32, %c0_i32_0 : i32, i32
  }
}

</mosaic_0001>

<llo_original>
// kernel: tpu_custom_call.1
$region0: #{tpu_custom_call.1}
  #allocation0 [shape = 'u32[]', space=smem, size = 0x4, offset = 0x4, fixed_abs, tag = 'smem constant byte address 0x4 - core index']
  #allocation1 [shape = 'u32[72,128]{1,0:T(1,128)}', space=vmem, size = 0x9000, scoped, tag = 'internal scratch']
  %s0 = inlined_call_operand.hbm [shape: f32[8,8,128], index: 0, kind: input, shape index: {}]
  %s1 = inlined_call_operand.hbm [shape: f32[128,512], index: 1, kind: input, shape index: {}]
  %s2 = inlined_call_operand.hbm [shape: f32[128,512], index: 2, kind: input, shape index: {}]
  %s3 = inlined_call_operand.hbm [shape: f32[1,512], index: 3, kind: input, shape index: {}]
  %s4 = inlined_call_operand.hbm [shape: f32[8,128], index: 4, kind: output, shape index: {0}]
  %s5 = inlined_call_operand.hbm [shape: f32[8,128], index: 5, kind: output, shape index: {1}]
  %6 = xla_tuple %s4, %s5
  %s7 = sld [smem:[#allocation0]]
  $region77: #{tpu_custom_call.1} parent=0
    _
  %s9 = ssub.s32 1, %s7
  %s10 = scalar_select 0, %s9, %s7
  $region1: #{tpu_custom_call.1} parent=0
    #allocation2 [shape = 'u8[8192]{0}', space=vmem, size = 0x2000, scoped, tag = 'input window, operand 0']
    #allocation3 [shape = 's32[2]{0}', space=sflag, size = 0x8, scoped, tag = 'scoped memory for tpu_custom_call.1']
    #allocation4 [shape = 's32[2]{0}', space=sflag, size = 0x8, scoped, tag = 'scoped memory for tpu_custom_call.1']
    #allocation5 [shape = 'u8[262144]{0}', space=vmem, size = 0x40000, scoped, tag = 'input window, operand 1, single buffered']
    #allocation6 [shape = 's32[1]{0}', space=sflag, size = 0x4, scoped, tag = 'scoped memory for tpu_custom_call.1']
    #allocation7 [shape = 'u8[262144]{0}', space=vmem, size = 0x40000, scoped, tag = 'input window, operand 2, single buffered']
    #allocation8 [shape = 'u8[2048]{0}', space=vmem, size = 0x800, scoped, tag = 'input window, operand 3, single buffered']
    #allocation9 [shape = 's32[1]{0}', space=sflag, size = 0x4, scoped, tag = 'scoped memory for tpu_custom_call.1']
    #allocation10 [shape = 'u8[4096]{0}', space=vmem, size = 0x1000, scoped, tag = 'output window, operand 0, single buffered']
    #allocation11 [shape = 'u8[4096]{0}', space=vmem, size = 0x1000, scoped, tag = 'output window, operand 1, single buffered']
    #allocation12 [shape = 's32[1]{0}', space=sflag, size = 0x4, scoped, tag = 'scoped memory for tpu_custom_call.1']
    %11 = vsyncpa [#allocation3], 0
    %s12 = scalar_lea.sflag [#allocation3], 1
    %13 = vsyncpa %s12, 0
    %14 = vsyncpa [#allocation6], 0
    %15 = vsyncpa [#allocation9], 0
    %16 = vsyncpa [#allocation4], 0
    %17 = vsyncpa [#allocation12], 0
    loop: start=0, step=1, limit=10
    $region2: #{tpu_custom_call.1} parent=1 // loop_pre_header
      _
    $region3: #{tpu_custom_call.1} parent=1 // loop_header
      %s19 = sphi 0, %s23
      %p20 = scmp.ge.s32.totalorder %s19, 10
      %s29 = sphi 0, %s31
      %s32 = sphi 0, %s29
      %s33 = sphi 0, %s32
      %s49 = sphi 0, %s33
      %s53 = sphi 0, %s53
      %s55 = sphi 0, %s53
      %s56 = sphi 0, %s55
      %s70 = sphi 0, %s56
      %s74 = sphi 0, %s74
      %s76 = sphi 0, %s74
      %s77 = sphi 0, %s76
      %s91 = sphi 0, %s77
      %s95 = sphi 0, %s95
      %s97 = sphi 0, %s95
      %s98 = sphi 0, %s97
      %s112 = sphi 0, %s98
      %s116 = sphi 0, %s116
      %s118 = sphi 0, %s116
      %s119 = sphi 0, %s118
      %s133 = sphi 0, %s119
      %s137 = sphi 0, %s137
      %s139 = sphi 0, %s137
      %s140 = sphi 0, %s139
      %s154 = sphi 0, %s140
    $region4: #{tpu_custom_call.1} parent=1 // loop_header_branch
      %22 = sbr.rel (%p20) target = $region8
    $region5: #{tpu_custom_call.1} parent=1 // loop_body
      %s24 = ssub.s32 %s19, 1
      %s25 = ssub.s32 %s19, 2
      %s26 = sadd.s32 %s19, 1
      %s27 = ssub.s32 %s19, %s26
      %p28 = scmp.eq.s32.totalorder %s27, 0
      %s30 = sadd.s32 %s29, 1
      %s31 = scalar_select %p28, %s29, %s30
      %p34 = pneg %p28
      %p35 = scmp.eq.s32.totalorder %s19, 7
      %p36 = por %p34, %p35
      %p37 = scmp.ne.s32.totalorder %s29, %s32
      %p38 = scmp.eq.s32.totalorder %s19, 0
      %p39 = por %p37, %p38
      %p40 = scmp.ne.s32.totalorder %s29, %s32
      %p41 = scmp.eq.s32.totalorder %s24, 7
      %p42 = por %p40, %p41
      %p43 = scmp.ne.s32.totalorder %s32, %s33
      %p44 = scmp.eq.s32.totalorder %s24, 0
      %p45 = por %p43, %p44
      %p46 = scmp.ne.s32.totalorder %s32, %s33
      %p47 = scmp.eq.s32.totalorder %s25, 7
      %p48 = por %p46, %p47
      %p50 = scmp.ne.s32.totalorder %s33, %s49
      %p51 = scmp.eq.s32.totalorder %s25, 0
      %p52 = por %p50, %p51
      %s54 = sadd.s32 %s53, 1
      %p57 = scmp.eq.s32.totalorder %s19, 7
      %p58 = scmp.ne.s32.totalorder %s53, %s55
      %p59 = scmp.eq.s32.totalorder %s19, 0
      %p60 = por %p58, %p59
      %p61 = scmp.ne.s32.totalorder %s53, %s55
      %p62 = scmp.eq.s32.totalorder %s24, 7
      %p63 = por %p61, %p62
      %p64 = scmp.ne.s32.totalorder %s55, %s56
      %p65 = scmp.eq.s32.totalorder %s24, 0
      %p66 = por %p64, %p65
      %p67 = scmp.ne.s32.totalorder %s55, %s56
      %p68 = scmp.eq.s32.totalorder %s25, 7
      %p69 = por %p67, %p68
      %p71 = scmp.ne.s32.totalorder %s56, %s70
      %p72 = scmp.eq.s32.totalorder %s25, 0
      %p73 = por %p71, %p72
      %s75 = sadd.s32 %s74, 1
      %p78 = scmp.eq.s32.totalorder %s19, 7
      %p79 = scmp.ne.s32.totalorder %s74, %s76
      %p80 = scmp.eq.s32.totalorder %s19, 0
      %p81 = por %p79, %p80
      %p82 = scmp.ne.s32.totalorder %s74, %s76
      %p83 = scmp.eq.s32.totalorder %s24, 7
      %p84 = por %p82, %p83
      %p85 = scmp.ne.s32.totalorder %s76, %s77
      %p86 = scmp.eq.s32.totalorder %s24, 0
      %p87 = por %p85, %p86
      %p88 = scmp.ne.s32.totalorder %s76, %s77
      %p89 = scmp.eq.s32.totalorder %s25, 7
      %p90 = por %p88, %p89
      %p92 = scmp.ne.s32.totalorder %s77, %s91
      %p93 = scmp.eq.s32.totalorder %s25, 0
      %p94 = por %p92, %p93
      %s96 = sadd.s32 %s95, 1
      %p99 = scmp.eq.s32.totalorder %s19, 7
      %p100 = scmp.ne.s32.totalorder %s95, %s97
      %p101 = scmp.eq.s32.totalorder %s19, 0
      %p102 = por %p100, %p101
      %p103 = scmp.ne.s32.totalorder %s95, %s97
      %p104 = scmp.eq.s32.totalorder %s24, 7
      %p105 = por %p103, %p104
      %p106 = scmp.ne.s32.totalorder %s97, %s98
      %p107 = scmp.eq.s32.totalorder %s24, 0
      %p108 = por %p106, %p107
      %p109 = scmp.ne.s32.totalorder %s97, %s98
      %p110 = scmp.eq.s32.totalorder %s25, 7
      %p111 = por %p109, %p110
      %p113 = scmp.ne.s32.totalorder %s98, %s112
      %p114 = scmp.eq.s32.totalorder %s25, 0
      %p115 = por %p113, %p114
      %s117 = sadd.s32 %s116, 1
      %p120 = scmp.eq.s32.totalorder %s19, 7
      %p121 = scmp.ne.s32.totalorder %s116, %s118
      %p122 = scmp.eq.s32.totalorder %s19, 0
      %p123 = por %p121, %p122
      %p124 = scmp.ne.s32.totalorder %s116, %s118
      %p125 = scmp.eq.s32.totalorder %s24, 7
      %p126 = por %p124, %p125
      %p127 = scmp.ne.s32.totalorder %s118, %s119
      %p128 = scmp.eq.s32.totalorder %s24, 0
      %p129 = por %p127, %p128
      %p130 = scmp.ne.s32.totalorder %s118, %s119
      %p131 = scmp.eq.s32.totalorder %s25, 7
      %p132 = por %p130, %p131
      %p134 = scmp.ne.s32.totalorder %s119, %s133
      %p135 = scmp.eq.s32.totalorder %s25, 0
      %p136 = por %p134, %p135
      %s138 = sadd.s32 %s137, 1
      %p141 = scmp.eq.s32.totalorder %s19, 7
      %p142 = scmp.ne.s32.totalorder %s137, %s139
      %p143 = scmp.eq.s32.totalorder %s19, 0
      %p144 = por %p142, %p143
      %p145 = scmp.ne.s32.totalorder %s137, %s139
      %p146 = scmp.eq.s32.totalorder %s24, 7
      %p147 = por %p145, %p146
      %p148 = scmp.ne.s32.totalorder %s139, %s140
      %p149 = scmp.eq.s32.totalorder %s24, 0
      %p150 = por %p148, %p149
      %p151 = scmp.ne.s32.totalorder %s139, %s140
      %p152 = scmp.eq.s32.totalorder %s25, 7
      %p153 = por %p151, %p152
      %p155 = scmp.ne.s32.totalorder %s140, %s154
      %p156 = scmp.eq.s32.totalorder %s25, 0
      %p157 = por %p155, %p156
      %p158 = scmp.le.s32.totalorder 1, %s19
      %p159 = scmp.lt.s32.totalorder %s19, 9
      %p160 = pnand %p158, %p159
      %p161 = pneg %p160
      // Predicated region
      $region9: #{tpu_custom_call.1} parent=5 // pred_check
        _
      $region10: #{tpu_custom_call.1} parent=5 // pred_check_branch
        %163 = sbr.rel (%p160) target = $region12
      $region11: #{tpu_custom_call.1} parent=5 // pred_region
        %s164 = ssub.s32 %s19, 1
        // Predicated region
        $region13: #{tpu_custom_call.1} parent=11 // pred_check
          %p165 = pneg %p66
        $region14: #{tpu_custom_call.1} parent=11 // pred_check_branch
          %167 = sbr.rel (%p165) target = $region16
        $region15: #{tpu_custom_call.1} parent=11 // pred_region
          %169 = vsyncadd [#allocation6], 0
          %s170 = sshll.u32 %s1, 4
          %s171 = int_to_ptr.hbm [resolvable:$true] %s170
          %s172 = sshll.u32 [#allocation5], 4
          %s173 = int_to_ptr.vmem [resolvable:$true] %s172
          %178 = dma.hbm_to_vmem [thread:$0]  %s171, 8192, %s173, [#allocation6], 512, 512, 32
        $region16: #{tpu_custom_call.1} parent=11 // pred_fallthru
          _
        // Predicated region
        $region17: #{tpu_custom_call.1} parent=11 // pred_check
          %p179 = pneg %p87
        $region18: #{tpu_custom_call.1} parent=11 // pred_check_branch
          %181 = sbr.rel (%p179) target = $region20
        $region19: #{tpu_custom_call.1} parent=11 // pred_region
          %183 = vsyncadd [#allocation6], 0
          %s184 = sshll.u32 %s2, 4
          %s185 = int_to_ptr.hbm [resolvable:$true] %s184
          %s186 = sshll.u32 [#allocation7], 4
          %s187 = int_to_ptr.vmem [resolvable:$true] %s186
          %192 = dma.hbm_to_vmem [thread:$0]  %s185, 8192, %s187, [#allocation6], 512, 512, 32
        $region20: #{tpu_custom_call.1} parent=11 // pred_fallthru
          _
        // Predicated region
        $region21: #{tpu_custom_call.1} parent=11 // pred_check
          %p193 = pneg %p108
        $region22: #{tpu_custom_call.1} parent=11 // pred_check_branch
          %195 = sbr.rel (%p193) target = $region24
        $region23: #{tpu_custom_call.1} parent=11 // pred_region
          %197 = vsyncadd [#allocation9], 0
          %s199 = sshll.u32 %s3, 4
          %s200 = int_to_ptr.hbm [resolvable:$true] %s199
          %s201 = sshll.u32 [#allocation8], 4
          %s202 = int_to_ptr.vmem [resolvable:$true] %s201
          %204 = dma.hbm_to_vmem [thread:$0]  %s200, 64, %s202, [#allocation9]
        $region24: #{tpu_custom_call.1} parent=11 // pred_fallthru
          _
      $region12: #{tpu_custom_call.1} parent=5 // pred_fallthru
        _
      %p205 = scmp.lt.s32.totalorder %s19, 8
      // Predicated region
      $region25: #{tpu_custom_call.1} parent=5 // pred_check
        %p206 = pneg %p205
      $region26: #{tpu_custom_call.1} parent=5 // pred_check_branch
        %208 = sbr.rel (%p206) target = $region28
      $region27: #{tpu_custom_call.1} parent=5 // pred_region
        // Predicated region
        $region29: #{tpu_custom_call.1} parent=27 // pred_check
          %p209 = pneg %p39
        $region30: #{tpu_custom_call.1} parent=27 // pred_check_branch
          %211 = sbr.rel (%p209) target = $region32
        $region31: #{tpu_custom_call.1} parent=27 // pred_region
          %s212 = sand.u32 %s29, 1
          %s213 = scalar_lea.sflag [#allocation3], %s212
          %s214 = sand.u32 %s29, 1
          %s215 = smul.addr %s214, 8
          %s216 = scalar_lea.vmem [#allocation2], %s215
          %218 = vsyncadd %s213, 0
          %s219 = smul.addr %s19, 8
          %s220 = scalar_lea.hbm %s0, %s219
          %s222 = sshll.u32 %s220, 4
          %s223 = int_to_ptr.hbm [resolvable:$true] %s222
          %s224 = sshll.u32 %s216, 4
          %s225 = int_to_ptr.vmem [resolvable:$true] %s224
          %227 = dma.hbm_to_vmem [thread:$0]  %s223, 128, %s225, %s213
        $region32: #{tpu_custom_call.1} parent=27 // pred_fallthru
          _
      $region28: #{tpu_custom_call.1} parent=5 // pred_fallthru
        _
      %p228 = scmp.le.s32.totalorder 1, %s19
      %p229 = scmp.lt.s32.totalorder %s19, 9
      %p230 = pnand %p228, %p229
      %p231 = pneg %p230
      // Predicated region
      $region33: #{tpu_custom_call.1} parent=5 // pred_check
        _
      $region34: #{tpu_custom_call.1} parent=5 // pred_check_branch
        %233 = sbr.rel (%p230) target = $region36
      $region35: #{tpu_custom_call.1} parent=5 // pred_region
        %s234 = ssub.s32 %s19, 1
        %s235 = sand.u32 %s32, 1
        %s236 = scalar_lea.sflag [#allocation3], %s235
        %s237 = sand.u32 %s32, 1
        %s238 = smul.addr %s237, 8
        %s239 = scalar_lea.vmem [#allocation2], %s238
        // Predicated region
        $region37: #{tpu_custom_call.1} parent=35 // pred_check
          %p240 = pneg %p45
        $region38: #{tpu_custom_call.1} parent=35 // pred_check_branch
          %242 = sbr.rel (%p240) target = $region40
        $region39: #{tpu_custom_call.1} parent=35 // pred_region
          %244 = dma.done %s236, 128
        $region40: #{tpu_custom_call.1} parent=35 // pred_fallthru
          _
        // Predicated region
        $region41: #{tpu_custom_call.1} parent=35 // pred_check
          %p245 = pneg %p66
        $region42: #{tpu_custom_call.1} parent=35 // pred_check_branch
          %247 = sbr.rel (%p245) target = $region44
        $region43: #{tpu_custom_call.1} parent=35 // pred_region
          %249 = dma.done [#allocation6], 8192
        $region44: #{tpu_custom_call.1} parent=35 // pred_fallthru
          _
        // Predicated region
        $region45: #{tpu_custom_call.1} parent=35 // pred_check
          %p250 = pneg %p87
        $region46: #{tpu_custom_call.1} parent=35 // pred_check_branch
          %252 = sbr.rel (%p250) target = $region48
        $region47: #{tpu_custom_call.1} parent=35 // pred_region
          %254 = dma.done [#allocation6], 8192
        $region48: #{tpu_custom_call.1} parent=35 // pred_fallthru
          _
        // Predicated region
        $region49: #{tpu_custom_call.1} parent=35 // pred_check
          %p255 = pneg %p108
        $region50: #{tpu_custom_call.1} parent=35 // pred_check_branch
          %257 = sbr.rel (%p255) target = $region52
        $region51: #{tpu_custom_call.1} parent=35 // pred_region
          %259 = dma.done [#allocation9], 64
        $region52: #{tpu_custom_call.1} parent=35 // pred_fallthru
          _
        %s260 = sand.u32 %s32, 1
        %s261 = scalar_lea.sflag [#allocation3], %s260
        %s262 = sand.u32 %s32, 1
        %s263 = smul.addr %s262, 8
        %s264 = scalar_lea.vmem [#allocation2], %s263
        %p265 = pneg %p45
        %p266 = pneg %p42
        %p267 = pneg %p66
        %p268 = pneg %p63
        %p269 = pneg %p87
        %p270 = pneg %p84
        %p271 = pneg %p108
        %p272 = pneg %p105
        %p273 = pneg %p129
        %p274 = pneg %p126
        %p275 = pneg %p150
        %p276 = pneg %p147
        %p277 = scmp.eq.s32.totalorder %s24, 0
        // Predicated region
        $region53: #{tpu_custom_call.1} parent=35 // pred_check
          %p278 = pneg %p277
        $region54: #{tpu_custom_call.1} parent=35 // pred_check_branch
          %280 = sbr.rel (%p278) target = $region56
        $region55: #{tpu_custom_call.1} parent=35 // pred_region
          %281 = vst [vmem:[#allocation10] sm:$0xff] 0.0
          %282 = vst [vmem:[#allocation11] sm:$0xff] 0.0
        $region56: #{tpu_custom_call.1} parent=35 // pred_fallthru
          _
        %v283 = vld [vmem:[%s239] sm:$0xff]
        %v284 = vld [vmem:[#allocation10] sm:$0xff]
        %v285 = vld [vmem:[#allocation11] sm:$0xff]
        %v286 = vld [vmem:[#allocation5] sm:$0xff]
        %v287 = vld [vmem:[#allocation5 + $0x8] sm:$0xff]
        %v288 = vld [vmem:[#allocation5 + $0x10] sm:$0xff]
        %v289 = vld [vmem:[#allocation5 + $0x18] sm:$0xff]
        %v290 = vld [vmem:[#allocation5 + $0x20] sm:$0xff]
        %v291 = vld [vmem:[#allocation5 + $0x28] sm:$0xff]
        %v292 = vld [vmem:[#allocation5 + $0x30] sm:$0xff]
        %v293 = vld [vmem:[#allocation5 + $0x38] sm:$0xff]
        %v294 = vld [vmem:[#allocation5 + $0x40] sm:$0xff]
        %v295 = vld [vmem:[#allocation5 + $0x48] sm:$0xff]
        %v296 = vld [vmem:[#allocation5 + $0x50] sm:$0xff]
        %v297 = vld [vmem:[#allocation5 + $0x58] sm:$0xff]
        %v298 = vld [vmem:[#allocation5 + $0x60] sm:$0xff]
        %v299 = vld [vmem:[#allocation5 + $0x68] sm:$0xff]
        %v300 = vld [vmem:[#allocation5 + $0x70] sm:$0xff]
        %v301 = vld [vmem:[#allocation5 + $0x78] sm:$0xff]
        %v302 = vld [vmem:[#allocation5 + $0x80] sm:$0xff]
        %v303 = vld [vmem:[#allocation5 + $0x88] sm:$0xff]
        %v304 = vld [vmem:[#allocation5 + $0x90] sm:$0xff]
        %v305 = vld [vmem:[#allocation5 + $0x98] sm:$0xff]
        %v306 = vld [vmem:[#allocation5 + $0xa0] sm:$0xff]
        %v307 = vld [vmem:[#allocation5 + $0xa8] sm:$0xff]
        %v308 = vld [vmem:[#allocation5 + $0xb0] sm:$0xff]
        %v309 = vld [vmem:[#allocation5 + $0xb8] sm:$0xff]
        %v310 = vld [vmem:[#allocation5 + $0xc0] sm:$0xff]
        %v311 = vld [vmem:[#allocation5 + $0xc8] sm:$0xff]
        %v312 = vld [vmem:[#allocation5 + $0xd0] sm:$0xff]
        %v313 = vld [vmem:[#allocation5 + $0xd8] sm:$0xff]
        %v314 = vld [vmem:[#allocation5 + $0xe0] sm:$0xff]
        %v315 = vld [vmem:[#allocation5 + $0xe8] sm:$0xff]
        %v316 = vld [vmem:[#allocation5 + $0xf0] sm:$0xff]
        %v317 = vld [vmem:[#allocation5 + $0xf8] sm:$0xff]
        %v318 = vld [vmem:[#allocation5 + $0x100] sm:$0xff]
        %v319 = vld [vmem:[#allocation5 + $0x108] sm:$0xff]
        %v320 = vld [vmem:[#allocation5 + $0x110] sm:$0xff]
        %v321 = vld [vmem:[#allocation5 + $0x118] sm:$0xff]
        %v322 = vld [vmem:[#allocation5 + $0x120] sm:$0xff]
        %v323 = vld [vmem:[#allocation5 + $0x128] sm:$0xff]
        %v324 = vld [vmem:[#allocation5 + $0x130] sm:$0xff]
        %v325 = vld [vmem:[#allocation5 + $0x138] sm:$0xff]
        %v326 = vld [vmem:[#allocation5 + $0x140] sm:$0xff]
        %v327 = vld [vmem:[#allocation5 + $0x148] sm:$0xff]
        %v328 = vld [vmem:[#allocation5 + $0x150] sm:$0xff]
        %v329 = vld [vmem:[#allocation5 + $0x158] sm:$0xff]
        %v330 = vld [vmem:[#allocation5 + $0x160] sm:$0xff]
        %v331 = vld [vmem:[#allocation5 + $0x168] sm:$0xff]
        %v332 = vld [vmem:[#allocation5 + $0x170] sm:$0xff]
        %v333 = vld [vmem:[#allocation5 + $0x178] sm:$0xff]
        %v334 = vld [vmem:[#allocation5 + $0x180] sm:$0xff]
        %v335 = vld [vmem:[#allocation5 + $0x188] sm:$0xff]
        %v336 = vld [vmem:[#allocation5 + $0x190] sm:$0xff]
        %v337 = vld [vmem:[#allocation5 + $0x198] sm:$0xff]
        %v338 = vld [vmem:[#allocation5 + $0x1a0] sm:$0xff]
        %v339 = vld [vmem:[#allocation5 + $0x1a8] sm:$0xff]
        %v340 = vld [vmem:[#allocation5 + $0x1b0] sm:$0xff]
        %v341 = vld [vmem:[#allocation5 + $0x1b8] sm:$0xff]
        %v342 = vld [vmem:[#allocation5 + $0x1c0] sm:$0xff]
        %v343 = vld [vmem:[#allocation5 + $0x1c8] sm:$0xff]
        %v344 = vld [vmem:[#allocation5 + $0x1d0] sm:$0xff]
        %v345 = vld [vmem:[#allocation5 + $0x1d8] sm:$0xff]
        %v346 = vld [vmem:[#allocation5 + $0x1e0] sm:$0xff]
        %v347 = vld [vmem:[#allocation5 + $0x1e8] sm:$0xff]
        %v348 = vld [vmem:[#allocation5 + $0x1f0] sm:$0xff]
        %v349 = vld [vmem:[#allocation5 + $0x1f8] sm:$0xff]
        %v350 = vld [vmem:[#allocation7] sm:$0xff]
        %v351 = vld [vmem:[#allocation7 + $0x8] sm:$0xff]
        %v352 = vld [vmem:[#allocation7 + $0x10] sm:$0xff]
        %v353 = vld [vmem:[#allocation7 + $0x18] sm:$0xff]
        %v354 = vld [vmem:[#allocation7 + $0x20] sm:$0xff]
        %v355 = vld [vmem:[#allocation7 + $0x28] sm:$0xff]
        %v356 = vld [vmem:[#allocation7 + $0x30] sm:$0xff]
        %v357 = vld [vmem:[#allocation7 + $0x38] sm:$0xff]
        %v358 = vld [vmem:[#allocation7 + $0x40] sm:$0xff]
        %v359 = vld [vmem:[#allocation7 + $0x48] sm:$0xff]
        %v360 = vld [vmem:[#allocation7 + $0x50] sm:$0xff]
        %v361 = vld [vmem:[#allocation7 + $0x58] sm:$0xff]
        %v362 = vld [vmem:[#allocation7 + $0x60] sm:$0xff]
        %v363 = vld [vmem:[#allocation7 + $0x68] sm:$0xff]
        %v364 = vld [vmem:[#allocation7 + $0x70] sm:$0xff]
        %v365 = vld [vmem:[#allocation7 + $0x78] sm:$0xff]
        %v366 = vld [vmem:[#allocation7 + $0x80] sm:$0xff]
        %v367 = vld [vmem:[#allocation7 + $0x88] sm:$0xff]
        %v368 = vld [vmem:[#allocation7 + $0x90] sm:$0xff]
        %v369 = vld [vmem:[#allocation7 + $0x98] sm:$0xff]
        %v370 = vld [vmem:[#allocation7 + $0xa0] sm:$0xff]
        %v371 = vld [vmem:[#allocation7 + $0xa8] sm:$0xff]
        %v372 = vld [vmem:[#allocation7 + $0xb0] sm:$0xff]
        %v373 = vld [vmem:[#allocation7 + $0xb8] sm:$0xff]
        %v374 = vld [vmem:[#allocation7 + $0xc0] sm:$0xff]
        %v375 = vld [vmem:[#allocation7 + $0xc8] sm:$0xff]
        %v376 = vld [vmem:[#allocation7 + $0xd0] sm:$0xff]
        %v377 = vld [vmem:[#allocation7 + $0xd8] sm:$0xff]
        %v378 = vld [vmem:[#allocation7 + $0xe0] sm:$0xff]
        %v379 = vld [vmem:[#allocation7 + $0xe8] sm:$0xff]
        %v380 = vld [vmem:[#allocation7 + $0xf0] sm:$0xff]
        %v381 = vld [vmem:[#allocation7 + $0xf8] sm:$0xff]
        %v382 = vld [vmem:[#allocation7 + $0x100] sm:$0xff]
        %v383 = vld [vmem:[#allocation7 + $0x108] sm:$0xff]
        %v384 = vld [vmem:[#allocation7 + $0x110] sm:$0xff]
        %v385 = vld [vmem:[#allocation7 + $0x118] sm:$0xff]
        %v386 = vld [vmem:[#allocation7 + $0x120] sm:$0xff]
        %v387 = vld [vmem:[#allocation7 + $0x128] sm:$0xff]
        %v388 = vld [vmem:[#allocation7 + $0x130] sm:$0xff]
        %v389 = vld [vmem:[#allocation7 + $0x138] sm:$0xff]
        %v390 = vld [vmem:[#allocation7 + $0x140] sm:$0xff]
        %v391 = vld [vmem:[#allocation7 + $0x148] sm:$0xff]
        %v392 = vld [vmem:[#allocation7 + $0x150] sm:$0xff]
        %v393 = vld [vmem:[#allocation7 + $0x158] sm:$0xff]
        %v394 = vld [vmem:[#allocation7 + $0x160] sm:$0xff]
        %v395 = vld [vmem:[#allocation7 + $0x168] sm:$0xff]
        %v396 = vld [vmem:[#allocation7 + $0x170] sm:$0xff]
        %v397 = vld [vmem:[#allocation7 + $0x178] sm:$0xff]
        %v398 = vld [vmem:[#allocation7 + $0x180] sm:$0xff]
        %v399 = vld [vmem:[#allocation7 + $0x188] sm:$0xff]
        %v400 = vld [vmem:[#allocation7 + $0x190] sm:$0xff]
        %v401 = vld [vmem:[#allocation7 + $0x198] sm:$0xff]
        %v402 = vld [vmem:[#allocation7 + $0x1a0] sm:$0xff]
        %v403 = vld [vmem:[#allocation7 + $0x1a8] sm:$0xff]
        %v404 = vld [vmem:[#allocation7 + $0x1b0] sm:$0xff]
        %v405 = vld [vmem:[#allocation7 + $0x1b8] sm:$0xff]
        %v406 = vld [vmem:[#allocation7 + $0x1c0] sm:$0xff]
        %v407 = vld [vmem:[#allocation7 + $0x1c8] sm:$0xff]
        %v408 = vld [vmem:[#allocation7 + $0x1d0] sm:$0xff]
        %v409 = vld [vmem:[#allocation7 + $0x1d8] sm:$0xff]
        %v410 = vld [vmem:[#allocation7 + $0x1e0] sm:$0xff]
        %v411 = vld [vmem:[#allocation7 + $0x1e8] sm:$0xff]
        %v412 = vld [vmem:[#allocation7 + $0x1f0] sm:$0xff]
        %v413 = vld [vmem:[#allocation7 + $0x1f8] sm:$0xff]
        %414 = vmatpush.msra.mxu0 %v410
        %415 = vmatpush.msra.mxu0 %v406
        %416 = vmatpush.msra.mxu0 %v402
        %417 = vmatpush.msra.mxu0 %v398
        %418 = vmatpush.msra.mxu0 %v394
        %419 = vmatpush.msra.mxu0 %v390
        %420 = vmatpush.msra.mxu0 %v386
        %421 = vmatpush.msra.mxu0 %v382
        %422 = vmatpush.msra.mxu0 %v378
        %423 = vmatpush.msra.mxu0 %v374
        %424 = vmatpush.msra.mxu0 %v370
        %425 = vmatpush.msra.mxu0 %v366
        %426 = vmatpush.msra.mxu0 %v362
        %427 = vmatpush.msra.mxu0 %v358
        %428 = vmatpush.msra.mxu0 %v354
        %429 = vmatpush.msra.mxu0 %v350
        %430 = vmatmul.f32.gmra.mxu0 %v284
        %v431 = vpop.f32.mrf.mxu0
        %v432 = vadd.f32 0.0, %v431
        %433 = vdwg.mxu0
        %434 = vmatpush.msra.mxu0 %v411
        %435 = vmatpush.msra.mxu0 %v407
        %436 = vmatpush.msra.mxu0 %v403
        %437 = vmatpush.msra.mxu0 %v399
        %438 = vmatpush.msra.mxu0 %v395
        %439 = vmatpush.msra.mxu0 %v391
        %440 = vmatpush.msra.mxu0 %v387
        %441 = vmatpush.msra.mxu0 %v383
        %442 = vmatpush.msra.mxu0 %v379
        %443 = vmatpush.msra.mxu0 %v375
        %444 = vmatpush.msra.mxu0 %v371
        %445 = vmatpush.msra.mxu0 %v367
        %446 = vmatpush.msra.mxu0 %v363
        %447 = vmatpush.msra.mxu0 %v359
        %448 = vmatpush.msra.mxu0 %v355
        %449 = vmatpush.msra.mxu0 %v351
        %450 = vmatmul.f32.gmra.mxu0 %v284
        %v451 = vpop.f32.mrf.mxu0
        %v452 = vadd.f32 0.0, %v451
        %453 = vdwg.mxu0
        %454 = vmatpush.msra.mxu0 %v412
        %455 = vmatpush.msra.mxu0 %v408
        %456 = vmatpush.msra.mxu0 %v404
        %457 = vmatpush.msra.mxu0 %v400
        %458 = vmatpush.msra.mxu0 %v396
        %459 = vmatpush.msra.mxu0 %v392
        %460 = vmatpush.msra.mxu0 %v388
        %461 = vmatpush.msra.mxu0 %v384
        %462 = vmatpush.msra.mxu0 %v380
        %463 = vmatpush.msra.mxu0 %v376
        %464 = vmatpush.msra.mxu0 %v372
        %465 = vmatpush.msra.mxu0 %v368
        %466 = vmatpush.msra.mxu0 %v364
        %467 = vmatpush.msra.mxu0 %v360
        %468 = vmatpush.msra.mxu0 %v356
        %469 = vmatpush.msra.mxu0 %v352
        %470 = vmatmul.f32.gmra.mxu0 %v284
        %v471 = vpop.f32.mrf.mxu0
        %v472 = vadd.f32 0.0, %v471
        %473 = vdwg.mxu0
        %474 = vmatpush.msra.mxu0 %v413
        %475 = vmatpush.msra.mxu0 %v409
        %476 = vmatpush.msra.mxu0 %v405
        %477 = vmatpush.msra.mxu0 %v401
        %478 = vmatpush.msra.mxu0 %v397
        %479 = vmatpush.msra.mxu0 %v393
        %480 = vmatpush.msra.mxu0 %v389
        %481 = vmatpush.msra.mxu0 %v385
        %482 = vmatpush.msra.mxu0 %v381
        %483 = vmatpush.msra.mxu0 %v377
        %484 = vmatpush.msra.mxu0 %v373
        %485 = vmatpush.msra.mxu0 %v369
        %486 = vmatpush.msra.mxu0 %v365
        %487 = vmatpush.msra.mxu0 %v361
        %488 = vmatpush.msra.mxu0 %v357
        %489 = vmatpush.msra.mxu0 %v353
        %490 = vmatmul.f32.gmra.mxu0 %v284
        %v491 = vpop.f32.mrf.mxu0
        %v492 = vadd.f32 0.0, %v491
        %493 = vdwg.mxu0
        %494 = vmatpush.msra.mxu0 %v346
        %495 = vmatpush.msra.mxu0 %v342
        %496 = vmatpush.msra.mxu0 %v338
        %497 = vmatpush.msra.mxu0 %v334
        %498 = vmatpush.msra.mxu0 %v330
        %499 = vmatpush.msra.mxu0 %v326
        %500 = vmatpush.msra.mxu0 %v322
        %501 = vmatpush.msra.mxu0 %v318
        %502 = vmatpush.msra.mxu0 %v314
        %503 = vmatpush.msra.mxu0 %v310
        %504 = vmatpush.msra.mxu0 %v306
        %505 = vmatpush.msra.mxu0 %v302
        %506 = vmatpush.msra.mxu0 %v298
        %507 = vmatpush.msra.mxu0 %v294
        %508 = vmatpush.msra.mxu0 %v290
        %509 = vmatpush.msra.mxu0 %v286
        %510 = vmatmul.f32.gmra.mxu0 %v283
        %v511 = vpop.f32.mrf.mxu0
        %v512 = vadd.f32 %v432, %v511
        %513 = vdwg.mxu0
        %514 = vmatpush.msra.mxu0 %v347
        %515 = vmatpush.msra.mxu0 %v343
        %516 = vmatpush.msra.mxu0 %v339
        %517 = vmatpush.msra.mxu0 %v335
        %518 = vmatpush.msra.mxu0 %v331
        %519 = vmatpush.msra.mxu0 %v327
        %520 = vmatpush.msra.mxu0 %v323
        %521 = vmatpush.msra.mxu0 %v319
        %522 = vmatpush.msra.mxu0 %v315
        %523 = vmatpush.msra.mxu0 %v311
        %524 = vmatpush.msra.mxu0 %v307
        %525 = vmatpush.msra.mxu0 %v303
        %526 = vmatpush.msra.mxu0 %v299
        %527 = vmatpush.msra.mxu0 %v295
        %528 = vmatpush.msra.mxu0 %v291
        %529 = vmatpush.msra.mxu0 %v287
        %530 = vmatmul.f32.gmra.mxu0 %v283
        %v531 = vpop.f32.mrf.mxu0
        %v532 = vadd.f32 %v452, %v531
        %533 = vdwg.mxu0
        %534 = vmatpush.msra.mxu0 %v348
        %535 = vmatpush.msra.mxu0 %v344
        %536 = vmatpush.msra.mxu0 %v340
        %537 = vmatpush.msra.mxu0 %v336
        %538 = vmatpush.msra.mxu0 %v332
        %539 = vmatpush.msra.mxu0 %v328
        %540 = vmatpush.msra.mxu0 %v324
        %541 = vmatpush.msra.mxu0 %v320
        %542 = vmatpush.msra.mxu0 %v316
        %543 = vmatpush.msra.mxu0 %v312
        %544 = vmatpush.msra.mxu0 %v308
        %545 = vmatpush.msra.mxu0 %v304
        %546 = vmatpush.msra.mxu0 %v300
        %547 = vmatpush.msra.mxu0 %v296
        %548 = vmatpush.msra.mxu0 %v292
        %549 = vmatpush.msra.mxu0 %v288
        %550 = vmatmul.f32.gmra.mxu0 %v283
        %v551 = vpop.f32.mrf.mxu0
        %v552 = vadd.f32 %v472, %v551
        %553 = vdwg.mxu0
        %554 = vmatpush.msra.mxu0 %v349
        %555 = vmatpush.msra.mxu0 %v345
        %556 = vmatpush.msra.mxu0 %v341
        %557 = vmatpush.msra.mxu0 %v337
        %558 = vmatpush.msra.mxu0 %v333
        %559 = vmatpush.msra.mxu0 %v329
        %560 = vmatpush.msra.mxu0 %v325
        %561 = vmatpush.msra.mxu0 %v321
        %562 = vmatpush.msra.mxu0 %v317
        %563 = vmatpush.msra.mxu0 %v313
        %564 = vmatpush.msra.mxu0 %v309
        %565 = vmatpush.msra.mxu0 %v305
        %566 = vmatpush.msra.mxu0 %v301
        %567 = vmatpush.msra.mxu0 %v297
        %568 = vmatpush.msra.mxu0 %v293
        %569 = vmatpush.msra.mxu0 %v289
        %570 = vmatmul.f32.gmra.mxu0 %v283
        %v571 = vpop.f32.mrf.mxu0
        %v572 = vadd.f32 %v492, %v571
        %573 = vdwg.mxu0
        %v574 = vld [vmem:[#allocation8] sm:$0xf]
        %v576 = vperm.slane %v574, 0
        %v577 = vperm.slane %v574, 1
        %v578 = vperm.slane %v574, 2
        %v579 = vperm.slane %v574, 3
        %v584 = vadd.f32 %v512, %v576
        %v585 = vadd.f32 %v532, %v577
        %v586 = vadd.f32 %v552, %v578
        %v587 = vadd.f32 %v572, %v579
        %v588 = vxor.u32 %v584, 2147483648
        %v589 = vmul.f32 %v588, 1.442695
        %v590 = vpow.pop %v589
        %v591 = vadd.f32 %v590, 1.0
        %v592 = vrcp.pop %v591
        %v593 = vmul.f32 %v591, %v592
        %v594 = vsub.f32 1.0, %v593
        %v595 = vmul.f32 %v592, %v594
        %v596 = vadd.f32 %v592, %v595
        %vm597 = vweird.f32 %v591
        %vm598 = vweird.f32 %v592
        %vm599 = vmor %vm597, %vm598
        %v600 = vsel %vm599, %v592, %v596
        %v601 = vand.u32 2147483647, %v591
        %vm602 = vcmp.eq.f32.partialorder %v601, 8.507059e+37
        %v603 = vand.u32 %v591, 2147483648
        %v604 = vor.u32 1.1754944e-38, %v603
        %v605 = vsel %vm602, %v604, %v600
        %v606 = vmul.f32 1.0, %v605
        %v607 = vxor.u32 %v585, 2147483648
        %v608 = vmul.f32 %v607, 1.442695
        %v609 = vpow.pop %v608
        %v610 = vadd.f32 %v609, 1.0
        %v611 = vrcp.pop %v610
        %v612 = vmul.f32 %v610, %v611
        %v613 = vsub.f32 1.0, %v612
        %v614 = vmul.f32 %v611, %v613
        %v615 = vadd.f32 %v611, %v614
        %vm616 = vweird.f32 %v610
        %vm617 = vweird.f32 %v611
        %vm618 = vmor %vm616, %vm617
        %v619 = vsel %vm618, %v611, %v615
        %v620 = vand.u32 2147483647, %v610
        %vm621 = vcmp.eq.f32.partialorder %v620, 8.507059e+37
        %v622 = vand.u32 %v610, 2147483648
        %v623 = vor.u32 1.1754944e-38, %v622
        %v624 = vsel %vm621, %v623, %v619
        %v625 = vmul.f32 1.0, %v624
        %v626 = vtanh.pop %v586
        %v627 = vxor.u32 %v587, 2147483648
        %v628 = vmul.f32 %v627, 1.442695
        %v629 = vpow.pop %v628
        %v630 = vadd.f32 %v629, 1.0
        %v631 = vrcp.pop %v630
        %v632 = vmul.f32 %v630, %v631
        %v633 = vsub.f32 1.0, %v632
        %v634 = vmul.f32 %v631, %v633
        %v635 = vadd.f32 %v631, %v634
        %vm636 = vweird.f32 %v630
        %vm637 = vweird.f32 %v631
        %vm638 = vmor %vm636, %vm637
        %v639 = vsel %vm638, %v631, %v635
        %v640 = vand.u32 2147483647, %v630
        %vm641 = vcmp.eq.f32.partialorder %v640, 8.507059e+37
        %v642 = vand.u32 %v630, 2147483648
        %v643 = vor.u32 1.1754944e-38, %v642
        %v644 = vsel %vm641, %v643, %v639
        %v645 = vmul.f32 1.0, %v644
        %v646 = vmul.f32 %v625, %v285
        %v647 = vmul.f32 %v606, %v626
        %v648 = vadd.f32 %v646, %v647
        %v649 = vtanh.pop %v648
        %v650 = vmul.f32 %v645, %v649
        %651 = vst [vmem:[#allocation10] sm:$0xff] %v650
        %652 = vst [vmem:[#allocation11] sm:$0xff] %v648
        // Predicated region
        $region57: #{tpu_custom_call.1} parent=35 // pred_check
          %p653 = pneg %p126
        $region58: #{tpu_custom_call.1} parent=35 // pred_check_branch
          %655 = sbr.rel (%p653) target = $region60
        $region59: #{tpu_custom_call.1} parent=35 // pred_region
          %657 = vsyncadd [#allocation4], 0
          %s659 = sshll.u32 [#allocation10], 4
          %s660 = int_to_ptr.vmem [resolvable:$true] %s659
          %s661 = sshll.u32 %s4, 4
          %s662 = int_to_ptr.hbm [resolvable:$true] %s661
          %664 = dma.vmem_to_hbm [thread:$0]  %s660, 128, %s662, [#allocation4]
        $region60: #{tpu_custom_call.1} parent=35 // pred_fallthru
          _
        // Predicated region
        $region61: #{tpu_custom_call.1} parent=35 // pred_check
          %p665 = pneg %p147
        $region62: #{tpu_custom_call.1} parent=35 // pred_check_branch
          %667 = sbr.rel (%p665) target = $region64
        $region63: #{tpu_custom_call.1} parent=35 // pred_region
          %669 = vsyncadd [#allocation12], 0
          %s671 = sshll.u32 [#allocation11], 4
          %s672 = int_to_ptr.vmem [resolvable:$true] %s671
          %s673 = sshll.u32 %s5, 4
          %s674 = int_to_ptr.hbm [resolvable:$true] %s673
          %676 = dma.vmem_to_hbm [thread:$0]  %s672, 128, %s674, [#allocation12]
        $region64: #{tpu_custom_call.1} parent=35 // pred_fallthru
          _
        // Predicated region
        $region65: #{tpu_custom_call.1} parent=35 // pred_check
          %p677 = pneg %p126
        $region66: #{tpu_custom_call.1} parent=35 // pred_check_branch
          %679 = sbr.rel (%p677) target = $region68
        $region67: #{tpu_custom_call.1} parent=35 // pred_region
          %681 = dma.done [#allocation4], 128
        $region68: #{tpu_custom_call.1} parent=35 // pred_fallthru
          _
        // Predicated region
        $region69: #{tpu_custom_call.1} parent=35 // pred_check
          %p682 = pneg %p147
        $region70: #{tpu_custom_call.1} parent=35 // pred_check_branch
          %684 = sbr.rel (%p682) target = $region72
        $region71: #{tpu_custom_call.1} parent=35 // pred_region
          %686 = dma.done [#allocation12], 128
        $region72: #{tpu_custom_call.1} parent=35 // pred_fallthru
          _
      $region36: #{tpu_custom_call.1} parent=5 // pred_fallthru
        _
      %p687 = scmp.le.s32.totalorder 2, %s19
      // Predicated region
      $region73: #{tpu_custom_call.1} parent=5 // pred_check
        %p688 = pneg %p687
      $region74: #{tpu_custom_call.1} parent=5 // pred_check_branch
        %690 = sbr.rel (%p688) target = $region76
      $region75: #{tpu_custom_call.1} parent=5 // pred_region
        %s691 = ssub.s32 %s19, 2
      $region76: #{tpu_custom_call.1} parent=5 // pred_fallthru
        _
    $region6: #{tpu_custom_call.1} parent=1 // loop_footer
      %s23 = sadd.s32 1, %s19
    $region7: #{tpu_custom_call.1} parent=1 // loop_footer_branch
      %18 = sbr.rel target = $region3
    $region8: #{tpu_custom_call.1} parent=1 // loop_exit
      _
    %692 = vsyncpa [#allocation3], 1
    %s693 = scalar_lea.sflag [#allocation3], 1
    %694 = vsyncpa %s693, 1
    %695 = vsyncpa [#allocation6], 1
    %696 = vsyncpa [#allocation9], 1
    %697 = vsyncpa [#allocation4], 1
    %s698 = scalar_lea.sflag [#allocation4], 1
    %699 = vsyncpa %s698, 1
    %700 = vsyncpa [#allocation12], 1

</llo_original>
